<compile_context>
chip_gen: v7x
topology: tpu7x:2x2x1
jax: 0.10.0
libtpu: 0.0.40
codegen_flags: <defaults>
</compile_context>

<pallas_src>
import functools

import jax
import jax.numpy as jnp
import numpy as np
from jax import lax
from jax.experimental import pallas as pl
from jax.experimental.pallas import tpu as pltpu

LEAKY_SLOPE = 0.1
BN_EPS = 1e-5

_VMEM_ROWBLOCK_BUDGET = 40 * 2**20   # per-step footprint target (v7x has 64 MiB physical VMEM)
_VMEM_LIMIT_CAP = 64 * 2**20


# --------------------------------------------------------------------------
# Pallas kernel
# --------------------------------------------------------------------------
def _stage_block_kernel(x_ref, xt_ref, xb_ref, w1_ref, b1_ref, w2_ref, b2_ref,
                        o_ref, *, R, W, C, Cmid, slope):
    i = pl.program_id(1)
    nb = pl.num_programs(1)
    RW = R * W
    EW = (R + 2) * W            # rows including the 1-row halo above / below

    # ---- extended input slab (halo row, R block rows, halo row), bf16 for MXU ----
    x_ext = jnp.concatenate([xt_ref[...], x_ref[...], xb_ref[...]], axis=0)
    x_ext = x_ext.astype(jnp.bfloat16).reshape(EW, C)

    # ---- CBL1 on all R+2 rows (halo recompute is cheap):
    #      1x1 conv (BN1 scale folded into w1) + shift + LeakyReLU
    h1 = jnp.dot(x_ext, w1_ref[...], preferred_element_type=jnp.float32)
    h1 = h1 + b1_ref[...]
    h1 = jnp.maximum(h1, slope * h1)                     # leaky relu (slope < 1)

    # The 3x3 conv zero-pads CBL1's *output*, so halo rows lying outside the
    # image are zeroed at the h1 level (not at the x level).
    ridx = lax.broadcasted_iota(jnp.int32, (EW, 1), 0)
    keep = jnp.logical_and(jnp.logical_or(ridx >= W, i > 0),
                           jnp.logical_or(ridx < (R + 1) * W, i < nb - 1))
    h1b = jnp.where(keep, h1.astype(jnp.bfloat16), jnp.zeros((), jnp.bfloat16))
    h1b = h1b.reshape(R + 2, W, Cmid)

    # ---- CBL2: 3x3 conv (pad=1) with all 9 taps folded into K = 9*Cmid ----
    zcol = jnp.zeros((R + 2, 1, Cmid), jnp.bfloat16)
    left = jnp.concatenate([zcol, h1b[:, :W - 1, :]], axis=1)    # h1[y, x-1]
    right = jnp.concatenate([h1b[:, 1:, :], zcol], axis=1)       # h1[y, x+1]
    p3 = jnp.concatenate([left, h1b, right], axis=2)             # (R+2, W, 3*Cmid)
    # dy taps: output row y uses p3 rows y, y+1, y+2  (dy = -1, 0, +1).
    patch = jnp.concatenate([p3[0:R], p3[1:R + 1], p3[2:R + 2]], axis=2)
    patch = patch.reshape(RW, 9 * Cmid)                          # (R*W, 9*Cmid) bf16

    h2 = jnp.dot(patch, w2_ref[...], preferred_element_type=jnp.float32)  # (RW, C)
    h2 = h2 + b2_ref[...]
    h2 = jnp.maximum(h2, slope * h2)

    # ---- residual add (re-read x from VMEM instead of holding an f32 copy) ----
    out = x_ref[...].reshape(RW, C) + h2
    o_ref[...] = out.reshape(R, W, C).astype(o_ref.dtype)


# --------------------------------------------------------------------------
# Row-block sizing (per-step VMEM footprint)
# --------------------------------------------------------------------------
def _step_bytes(R, W, C, Cmid):
    xb = R * W * C * 4
    halo = W * C * 4
    ob = R * W * C * 4
    io = 2 * (xb + 2 * halo) + 2 * ob                             # double-buffered blocks
    wts = (C * Cmid + 9 * Cmid * C) * 2 + (Cmid + C) * 4          # resident weights/shifts
    ew = (R + 2) * W
    tmp = (ew * C * 2            # x_ext bf16
           + ew * Cmid * 4       # h1 f32
           + ew * Cmid * 2       # h1b bf16
           + ew * 3 * Cmid * 2   # left/right/p3 (p3 dominates)
           + R * W * 9 * Cmid * 2  # patch bf16
           + R * W * C * 4)        # h2 f32
    return io + wts + tmp


def _choose_row_block(H, W, C, Cmid, budget=_VMEM_ROWBLOCK_BUDGET):
    best = 1
    for r in range(1, H + 1):
        if H % r == 0 and _step_bytes(r, W, C, Cmid) <= budget:
            best = r
    return best


# --------------------------------------------------------------------------
# pallas_call wrapper (NHWC)
# --------------------------------------------------------------------------
def stage_block_pallas(x_nhwc, w1, b1, w2, b2, *, slope=LEAKY_SLOPE, row_block=None):
    """x_nhwc: (N,H,W,C) f32; w1:(C,Cmid) bf16; w2:(9*Cmid,C) bf16; b1,b2: f32 shifts."""
    N, H, W, C = x_nhwc.shape
    Cmid = w1.shape[1]
    assert w2.shape == (9 * Cmid, C)

    R = row_block if row_block is not None else _choose_row_block(H, W, C, Cmid)
    assert H % R == 0, "row block must divide H"
    nb = H // R

    kernel = functools.partial(_stage_block_kernel, R=R, W=W, C=C, Cmid=Cmid,
                               slope=slope)

    x_spec = pl.BlockSpec((pl.Squeezed(), R, W, C), lambda n, i: (n, i, 0, 0))
    # 1-row halo views of x (block size 1 along H -> block index == row index),
    # clamped at the image border; the out-of-image case is zero-masked in-kernel.
    top_spec = pl.BlockSpec((pl.Squeezed(), 1, W, C),
                            lambda n, i: (n, jnp.maximum(i * R - 1, 0), 0, 0))
    bot_spec = pl.BlockSpec((pl.Squeezed(), 1, W, C),
                            lambda n, i: (n, jnp.minimum(i * R + R, H - 1), 0, 0))

    grid_spec = pltpu.PrefetchScalarGridSpec(
        num_scalar_prefetch=0,
        grid=(N, nb),
        in_specs=[
            x_spec, top_spec, bot_spec,
            pl.BlockSpec((C, Cmid), lambda n, i: (0, 0)),        # w1 (BN1 scale folded)
            pl.BlockSpec((1, Cmid), lambda n, i: (0, 0)),        # bn1 shift
            pl.BlockSpec((9 * Cmid, C), lambda n, i: (0, 0)),    # w2 (BN2 scale folded)
            pl.BlockSpec((1, C), lambda n, i: (0, 0)),           # bn2 shift
        ],
        out_specs=pl.BlockSpec((pl.Squeezed(), R, W, C), lambda n, i: (n, i, 0, 0)),
    )

    flops = 2 * N * H * W * (C * Cmid + 9 * Cmid * C)
    bytes_accessed = (2 * N * H * W * C * 4
                      + (C * Cmid + 9 * Cmid * C) * 2 + (Cmid + C) * 4)
    est = _step_bytes(R, W, C, Cmid)
    vmem_limit = int(min(_VMEM_LIMIT_CAP, max(32 * 2**20, 2 * est)))

    return pl.pallas_call(
        kernel,
        out_shape=jax.ShapeDtypeStruct((N, H, W, C), x_nhwc.dtype),
        grid_spec=grid_spec,
        compiler_params=pltpu.CompilerParams(
            dimension_semantics=("parallel", "parallel"),
            vmem_limit_bytes=vmem_limit),
        cost_estimate=pl.CostEstimate(flops=flops, transcendentals=0,
                                      bytes_accessed=bytes_accessed),
    )(x_nhwc, x_nhwc, x_nhwc, w1, b1, w2, b2)


@functools.partial(jax.jit, static_argnames=("row_block",))
def stage_block_nhwc(x_nhwc, params, row_block=None):
    """Preferred entry point: keep the network NHWC across chained StageBlocks."""
    return stage_block_pallas(x_nhwc, *params, row_block=row_block)


# --------------------------------------------------------------------------
# PyTorch-layout parameters -> kernel parameters (BN scale folded, bf16 weights)
# --------------------------------------------------------------------------
def prepare_params(torch_params, mxu_dtype=jnp.bfloat16):
    (w1_oihw, g1, be1, m1, v1, w2_oihw, g2, be2, m2, v2) = torch_params
    Cmid, C = w1_oihw.shape[0], w1_oihw.shape[1]

    s1 = g1 / jnp.sqrt(v1 + BN_EPS)
    sh1 = be1 - m1 * s1
    s2 = g2 / jnp.sqrt(v2 + BN_EPS)
    sh2 = be2 - m2 * s2

    # 1x1 conv: OIHW (Cmid, C, 1, 1) -> (Cin=C, Cout=Cmid); BN1 scale folded into Cout.
    w1 = jnp.transpose(w1_oihw[:, :, 0, 0], (1, 0)) * s1[None, :]
    # 3x3 conv: OIHW (C, Cmid, 3, 3) -> HWIO (ky, kx, Cmid, C); BN2 scale folded;
    # (ky, kx, Cin) flattened so all 9 taps form one (9*Cmid, C) contraction.
    w2_hwio = jnp.transpose(w2_oihw, (2, 3, 1, 0)) * s2[None, None, None, :]
    w2r = w2_hwio.reshape(9 * Cmid, C)

    return (w1.astype(mxu_dtype),
            sh1.reshape(1, Cmid).astype(jnp.float32),
            w2r.astype(mxu_dtype),
            sh2.reshape(1, C).astype(jnp.float32))


# --------------------------------------------------------------------------
# Pure-JAX f32 reference (faithful to the PyTorch module, for correctness check)
# --------------------------------------------------------------------------
def _cbl_ref(x_nhwc, w_hwio, gamma, beta, mean, var, pad, slope):
    y = lax.conv_general_dilated(
        x_nhwc, w_hwio, window_strides=(1, 1),
        padding=[(pad, pad), (pad, pad)],
        dimension_numbers=("NHWC", "HWIO", "NHWC"))
    s = gamma / jnp.sqrt(var + BN_EPS)
    y = y * s + (beta - mean * s)
    return jnp.where(y > 0, y, slope * y)


def stage_block_ref(x_nchw, torch_params):
    (w1_oihw, g1, be1, m1, v1, w2_oihw, g2, be2, m2, v2) = torch_params
    x = jnp.transpose(x_nchw, (0, 2, 3, 1))
    h = _cbl_ref(x, jnp.transpose(w1_oihw, (2, 3, 1, 0)), g1, be1, m1, v1, 0, LEAKY_SLOPE)
    h = _cbl_ref(h, jnp.transpose(w2_oihw, (2, 3, 1, 0)), g2, be2, m2, v2, 1, LEAKY_SLOPE)
    return jnp.transpose(x + h, (0, 3, 1, 2))


# --------------------------------------------------------------------------
# Deterministic synthetic parameters in PyTorch layouts
# --------------------------------------------------------------------------
def make_torch_params(C, key):
    Cmid = C // 2
    k1, k2 = jax.random.split(key)
    w1 = jax.random.normal(k1, (Cmid, C, 1, 1), jnp.float32) * 0.1   # Conv2d OIHW
    w2 = jax.random.normal(k2, (C, Cmid, 3, 3), jnp.float32) * 0.05  # Conv2d OIHW

    def bn(n):
        gamma = 1.0 + 0.01 * jnp.arange(n, dtype=jnp.float32)
        beta = 0.02 * jnp.arange(n, dtype=jnp.float32)
        mean = 0.05 * jnp.arange(n, dtype=jnp.float32)
        var = 1.0 + 0.1 * jnp.arange(n, dtype=jnp.float32)
        return gamma, beta, mean, var

    g1, be1, m1, v1 = bn(Cmid)
    g2, be2, m2, v2 = bn(C)
    return (w1, g1, be1, m1, v1, w2, g2, be2, m2, v2)


if __name__ == "__main__":
    # Small but darknet-shaped: C=64 (Cmid=32), 16x16 spatial, batch 2.
    N, C, H, W = 2, 64, 16, 16
    key = jax.random.PRNGKey(0)
    x_nchw = jax.random.normal(jax.random.fold_in(key, 1), (N, C, H, W), jnp.float32)

    torch_params = make_torch_params(C, key)
    params = prepare_params(torch_params)

    # NCHW -> NHWC hoisted once, outside the kernel (and outside the whole
    # chained-StageBlock stack in a real network).
    x_nhwc = jnp.transpose(x_nchw, (0, 2, 3, 1))
    # row_block=4 forces several spatial grid steps so the halo path is exercised.
    y_nhwc = jax.block_until_ready(stage_block_nhwc(x_nhwc, params, row_block=4))
    out = jnp.transpose(y_nhwc, (0, 3, 1, 2))

    ref = jax.block_until_ready(stage_block_ref(x_nchw, torch_params))

    # bf16 MXU operands with f32 accumulation -> bf16-appropriate tolerance vs
    # the pure-f32 reference.
    np.testing.assert_allclose(np.asarray(out), np.asarray(ref),
                               rtol=2e-2, atol=5e-2)
    print("KERNEL_OK")
</pallas_src>

<mosaic_0001>
module attributes {stable_mosaic.version = 11 : i64} {
  func.func @_stage_block_kernel(%arg0: i32, %arg1: i32, %arg2: memref<1x4x16x64xf32, #tpu.memory_space<vmem>>, %arg3: memref<1x1x16x64xf32, #tpu.memory_space<vmem>>, %arg4: memref<1x1x16x64xf32, #tpu.memory_space<vmem>>, %arg5: memref<64x32xbf16, #tpu.memory_space<vmem>>, %arg6: memref<1x32xf32, #tpu.memory_space<vmem>>, %arg7: memref<288x64xbf16, #tpu.memory_space<vmem>>, %arg8: memref<1x64xf32, #tpu.memory_space<vmem>>, %arg9: memref<1x4x16x64xf32, #tpu.memory_space<vmem>>) attributes {dimension_semantics = [#tpu.dimension_semantics<parallel>, #tpu.dimension_semantics<parallel>], iteration_bounds = array<i64: 2, 4>, scalar_prefetch = 0 : i64, scratch_operands = 0 : i64, tpu.core_type = #tpu.core_type<tc>, window_params = [{transform_indices = @transform_0, window_bounds = array<i64: 1, 4, 16, 64>}, {transform_indices = @transform_1, window_bounds = array<i64: 1, 1, 16, 64>}, {transform_indices = @transform_2, window_bounds = array<i64: 1, 1, 16, 64>}, {pipeline_mode = #tpu.pipeline_mode<synchronous>, transform_indices = @transform_3, window_bounds = array<i64: 64, 32>}, {pipeline_mode = #tpu.pipeline_mode<synchronous>, transform_indices = @transform_4, window_bounds = array<i64: 1, 32>}, {pipeline_mode = #tpu.pipeline_mode<synchronous>, transform_indices = @transform_5, window_bounds = array<i64: 288, 64>}, {pipeline_mode = #tpu.pipeline_mode<synchronous>, transform_indices = @transform_6, window_bounds = array<i64: 1, 64>}, {transform_indices = @transform_7, window_bounds = array<i64: 1, 4, 16, 64>}]} {
    %c0 = arith.constant 0 : index
    %c0_0 = arith.constant 0 : index
    %c0_1 = arith.constant 0 : index
    %c0_2 = arith.constant 0 : index
    %0 = vector.load %arg3[%c0, %c0_0, %c0_1, %c0_2] : memref<1x1x16x64xf32, #tpu.memory_space<vmem>>, vector<1x1x16x64xf32>
    %1 = vector.shape_cast %0 : vector<1x1x16x64xf32> to vector<1x16x64xf32>
    %c0_3 = arith.constant 0 : index
    %c0_4 = arith.constant 0 : index
    %c0_5 = arith.constant 0 : index
    %c0_6 = arith.constant 0 : index
    %2 = vector.load %arg2[%c0_3, %c0_4, %c0_5, %c0_6] : memref<1x4x16x64xf32, #tpu.memory_space<vmem>>, vector<1x4x16x64xf32>
    %3 = vector.shape_cast %2 : vector<1x4x16x64xf32> to vector<4x16x64xf32>
    %c0_7 = arith.constant 0 : index
    %c0_8 = arith.constant 0 : index
    %c0_9 = arith.constant 0 : index
    %c0_10 = arith.constant 0 : index
    %4 = vector.load %arg4[%c0_7, %c0_8, %c0_9, %c0_10] : memref<1x1x16x64xf32, #tpu.memory_space<vmem>>, vector<1x1x16x64xf32>
    %5 = vector.shape_cast %4 : vector<1x1x16x64xf32> to vector<1x16x64xf32>
    %6 = tpu.concatenate %1, %3, %5 in 0 : vector<1x16x64xf32>, vector<4x16x64xf32>, vector<1x16x64xf32> -> vector<6x16x64xf32>
    %7 = arith.truncf %6 : vector<6x16x64xf32> to vector<6x16x64xbf16>
    %8 = vector.shape_cast %7 : vector<6x16x64xbf16> to vector<96x64xbf16>
    %c0_11 = arith.constant 0 : index
    %c0_12 = arith.constant 0 : index
    %9 = vector.load %arg5[%c0_11, %c0_12] : memref<64x32xbf16, #tpu.memory_space<vmem>>, vector<64x32xbf16>
    %cst = arith.constant dense<0.000000e+00> : vector<96x32xf32>
    %10 = tpu.matmul %8, %9, %cst {dimension_numbers = #tpu.dot_dimension_numbers<[1], [0], [0], [1], [0, 0, 1, 1], [], []>} : vector<96x64xbf16>, vector<64x32xbf16>, vector<96x32xf32> -> vector<96x32xf32>
    %c0_13 = arith.constant 0 : index
    %c0_14 = arith.constant 0 : index
    %11 = vector.load %arg6[%c0_13, %c0_14] : memref<1x32xf32, #tpu.memory_space<vmem>>, vector<1x32xf32>
    %12 = vector.broadcast %11 : vector<1x32xf32> to vector<96x32xf32>
    %13 = arith.addf %10, %12 : vector<96x32xf32>
    %cst_15 = arith.constant 1.000000e-01 : f32
    %14 = vector.broadcast %cst_15 : f32 to vector<96x32xf32>
    %15 = arith.mulf %14, %13 : vector<96x32xf32>
    %16 = arith.maximumf %13, %15 : vector<96x32xf32>
    %17 = tpu.iota {dimensions = array<i32: 0>} : vector<96x1xi32>
    %c16_i32 = arith.constant 16 : i32
    %18 = vector.broadcast %c16_i32 : i32 to vector<96x1xi32>
    %19 = arith.cmpi sge, %17, %18 : vector<96x1xi32>
    %c0_i32 = arith.constant 0 : i32
    %20 = arith.cmpi sgt, %arg1, %c0_i32 : i32
    %21 = vector.broadcast %20 : i1 to vector<96x1xi1>
    %22 = arith.ori %19, %21 : vector<96x1xi1>
    %c80_i32 = arith.constant 80 : i32
    %23 = vector.broadcast %c80_i32 : i32 to vector<96x1xi32>
    %24 = arith.cmpi slt, %17, %23 : vector<96x1xi32>
    %c3_i32 = arith.constant 3 : i32
    %25 = arith.cmpi slt, %arg1, %c3_i32 : i32
    %26 = vector.broadcast %25 : i1 to vector<96x1xi1>
    %27 = arith.ori %24, %26 : vector<96x1xi1>
    %28 = arith.andi %22, %27 : vector<96x1xi1>
    %29 = arith.truncf %16 : vector<96x32xf32> to vector<96x32xbf16>
    %cst_16 = arith.constant 0.000000e+00 : bf16
    %30 = vector.shape_cast %28 : vector<96x1xi1> to vector<96x1xi1>
    %31 = vector.broadcast %30 : vector<96x1xi1> to vector<96x32xi1>
    %32 = vector.broadcast %cst_16 : bf16 to vector<96x32xbf16>
    %33 = arith.select %31, %29, %32 : vector<96x32xi1>, vector<96x32xbf16>
    %34 = vector.shape_cast %33 : vector<96x32xbf16> to vector<6x16x32xbf16>
    %cst_17 = arith.constant 0.000000e+00 : bf16
    %35 = vector.broadcast %cst_17 : bf16 to vector<6x1x32xbf16>
    %36 = vector.extract_strided_slice %34 {offsets = [0, 0, 0], sizes = [6, 15, 32], strides = [1, 1, 1]} : vector<6x16x32xbf16> to vector<6x15x32xbf16>
    %37 = tpu.concatenate %35, %36 in 1 : vector<6x1x32xbf16>, vector<6x15x32xbf16> -> vector<6x16x32xbf16>
    %38 = vector.extract_strided_slice %34 {offsets = [0, 1, 0], sizes = [6, 15, 32], strides = [1, 1, 1]} : vector<6x16x32xbf16> to vector<6x15x32xbf16>
    %39 = tpu.concatenate %38, %35 in 1 : vector<6x15x32xbf16>, vector<6x1x32xbf16> -> vector<6x16x32xbf16>
    %40 = tpu.concatenate %37, %34, %39 in 2 : vector<6x16x32xbf16>, vector<6x16x32xbf16>, vector<6x16x32xbf16> -> vector<6x16x96xbf16>
    %41 = vector.extract_strided_slice %40 {offsets = [0, 0, 0], sizes = [4, 16, 96], strides = [1, 1, 1]} : vector<6x16x96xbf16> to vector<4x16x96xbf16>
    %42 = vector.extract_strided_slice %40 {offsets = [1, 0, 0], sizes = [4, 16, 96], strides = [1, 1, 1]} : vector<6x16x96xbf16> to vector<4x16x96xbf16>
    %43 = vector.extract_strided_slice %40 {offsets = [2, 0, 0], sizes = [4, 16, 96], strides = [1, 1, 1]} : vector<6x16x96xbf16> to vector<4x16x96xbf16>
    %44 = tpu.concatenate %41, %42, %43 in 2 : vector<4x16x96xbf16>, vector<4x16x96xbf16>, vector<4x16x96xbf16> -> vector<4x16x288xbf16>
    %45 = vector.shape_cast %44 : vector<4x16x288xbf16> to vector<64x288xbf16>
    %c0_18 = arith.constant 0 : index
    %c0_19 = arith.constant 0 : index
    %46 = vector.load %arg7[%c0_18, %c0_19] : memref<288x64xbf16, #tpu.memory_space<vmem>>, vector<288x64xbf16>
    %cst_20 = arith.constant dense<0.000000e+00> : vector<64x64xf32>
    %47 = tpu.matmul %45, %46, %cst_20 {dimension_numbers = #tpu.dot_dimension_numbers<[1], [0], [0], [1], [0, 0, 1, 1], [], []>} : vector<64x288xbf16>, vector<288x64xbf16>, vector<64x64xf32> -> vector<64x64xf32>
    %c0_21 = arith.constant 0 : index
    %c0_22 = arith.constant 0 : index
    %48 = vector.load %arg8[%c0_21, %c0_22] : memref<1x64xf32, #tpu.memory_space<vmem>>, vector<1x64xf32>
    %49 = vector.broadcast %48 : vector<1x64xf32> to vector<64x64xf32>
    %50 = arith.addf %47, %49 : vector<64x64xf32>
    %cst_23 = arith.constant 1.000000e-01 : f32
    %51 = vector.broadcast %cst_23 : f32 to vector<64x64xf32>
    %52 = arith.mulf %51, %50 : vector<64x64xf32>
    %53 = arith.maximumf %50, %52 : vector<64x64xf32>
    %c0_24 = arith.constant 0 : index
    %c0_25 = arith.constant 0 : index
    %c0_26 = arith.constant 0 : index
    %c0_27 = arith.constant 0 : index
    %54 = vector.load %arg2[%c0_24, %c0_25, %c0_26, %c0_27] : memref<1x4x16x64xf32, #tpu.memory_space<vmem>>, vector<1x4x16x64xf32>
    %55 = vector.shape_cast %54 : vector<1x4x16x64xf32> to vector<4x16x64xf32>
    %56 = vector.shape_cast %55 : vector<4x16x64xf32> to vector<64x64xf32>
    %57 = arith.addf %56, %53 : vector<64x64xf32>
    %58 = vector.shape_cast %57 : vector<64x64xf32> to vector<4x16x64xf32>
    %c0_28 = arith.constant 0 : index
    %c0_29 = arith.constant 0 : index
    %c0_30 = arith.constant 0 : index
    %c0_31 = arith.constant 0 : index
    %59 = vector.load %arg9[%c0_28, %c0_29, %c0_30, %c0_31] : memref<1x4x16x64xf32, #tpu.memory_space<vmem>>, vector<1x4x16x64xf32>
    %60 = vector.shape_cast %59 : vector<1x4x16x64xf32> to vector<4x16x64xf32>
    %61 = vector.shape_cast %58 : vector<4x16x64xf32> to vector<1x4x16x64xf32>
    tpu.vector_store %arg9[%c0_28, %c0_29, %c0_30, %c0_31], %61 {strides = array<i32>} : memref<1x4x16x64xf32, #tpu.memory_space<vmem>>, vector<1x4x16x64xf32>,
    return
  }
  func.func @transform_0(%arg0: i32, %arg1: i32) -> (i32, i32, i32, i32) {
    %c0_i32 = arith.constant 0 : i32
    %c0_i32_0 = arith.constant 0 : i32
    %c0_i32_1 = arith.constant 0 : i32
    return %arg0, %arg1, %c0_i32, %c0_i32_0 : i32, i32, i32, i32
  }
  func.func @transform_1(%arg0: i32, %arg1: i32) -> (i32, i32, i32, i32) {
    %c4_i32 = arith.constant 4 : i32
    %0 = arith.muli %arg1, %c4_i32 : i32
    %c1_i32 = arith.constant 1 : i32
    %1 = arith.subi %0, %c1_i32 : i32
    %c0_i32 = arith.constant 0 : i32
    %2 = arith.maxsi %1, %c0_i32 : i32
    %c0_i32_0 = arith.constant 0 : i32
    %c0_i32_1 = arith.constant 0 : i32
    %c0_i32_2 = arith.constant 0 : i32
    return %arg0, %2, %c0_i32_0, %c0_i32_1 : i32, i32, i32, i32
  }
  func.func @transform_2(%arg0: i32, %arg1: i32) -> (i32, i32, i32, i32) {
    %c4_i32 = arith.constant 4 : i32
    %0 = arith.muli %arg1, %c4_i32 : i32
    %c4_i32_0 = arith.constant 4 : i32
    %1 = arith.addi %0, %c4_i32_0 : i32
    %c15_i32 = arith.constant 15 : i32
    %2 = arith.minsi %1, %c15_i32 : i32
    %c0_i32 = arith.constant 0 : i32
    %c0_i32_1 = arith.constant 0 : i32
    %c0_i32_2 = arith.constant 0 : i32
    return %arg0, %2, %c0_i32, %c0_i32_1 : i32, i32, i32, i32
  }
  func.func @transform_3(%arg0: i32, %arg1: i32) -> (i32, i32) {
    %c0_i32 = arith.constant 0 : i32
    %c0_i32_0 = arith.constant 0 : i32
    %c0_i32_1 = arith.constant 0 : i32
    return %c0_i32, %c0_i32_0 : i32, i32
  }
  func.func @transform_4(%arg0: i32, %arg1: i32) -> (i32, i32) {
    %c0_i32 = arith.constant 0 : i32
    %c0_i32_0 = arith.constant 0 : i32
    %c0_i32_1 = arith.constant 0 : i32
    return %c0_i32, %c0_i32_0 : i32, i32
  }
  func.func @transform_5(%arg0: i32, %arg1: i32) -> (i32, i32) {
    %c0_i32 = arith.constant 0 : i32
    %c0_i32_0 = arith.constant 0 : i32
    %c0_i32_1 = arith.constant 0 : i32
    return %c0_i32, %c0_i32_0 : i32, i32
  }
  func.func @transform_6(%arg0: i32, %arg1: i32) -> (i32, i32) {
    %c0_i32 = arith.constant 0 : i32
    %c0_i32_0 = arith.constant 0 : i32
    %c0_i32_1 = arith.constant 0 : i32
    return %c0_i32, %c0_i32_0 : i32, i32
  }
  func.func @transform_7(%arg0: i32, %arg1: i32) -> (i32, i32, i32, i32) {
    %c0_i32 = arith.constant 0 : i32
    %c0_i32_0 = arith.constant 0 : i32
    %c0_i32_1 = arith.constant 0 : i32
    return %arg0, %arg1, %c0_i32, %c0_i32_0 : i32, i32, i32, i32
  }
}

</mosaic_0001>

<llo_original>
// kernel: stage_block_nhwc.1
$region0: #{stage_block_nhwc.1}
  #allocation0 [shape = 'u32[]', space=smem, size = 0x4, offset = 0x4, fixed_abs, tag = 'smem constant byte address 0x4 - core index']
  #allocation1 [shape = 'u32[144,128]{1,0:T(1,128)}', space=vmem, size = 0x12000, scoped, tag = 'internal scratch']
  %s0 = inlined_call_operand.hbm [shape: f32[2,16,16,64], index: 0, kind: input, shape index: {}, may-alias: {0,1,2}]
  %s1 = inlined_call_operand.hbm [shape: f32[2,16,16,64], index: 1, kind: input, shape index: {}, may-alias: {0,1,2}]
  %s2 = inlined_call_operand.hbm [shape: f32[2,16,16,64], index: 2, kind: input, shape index: {}, may-alias: {0,1,2}]
  %s3 = inlined_call_operand.vmem [shape: bf16[64,32], index: 3, kind: input, shape index: {}]
  %s4 = inlined_call_operand.vmem [shape: f32[1,32], index: 4, kind: input, shape index: {}]
  %s5 = inlined_call_operand.vmem [shape: bf16[288,64], index: 5, kind: input, shape index: {}]
  %s6 = inlined_call_operand.vmem [shape: f32[1,64], index: 6, kind: input, shape index: {}]
  %s7 = inlined_call_operand.hbm [shape: f32[2,16,16,64], index: 7, kind: output, shape index: {}]
  %s8 = sld [smem:[#allocation0]]
  $region73: #{stage_block_nhwc.1} parent=0
    _
  %s10 = ssub.s32 1, %s8
  %s11 = scalar_select 0, %s10, %s8
  $region1: #{stage_block_nhwc.1} parent=0
    #allocation2 [shape = 'u8[65536]{0}', space=vmem, size = 0x10000, scoped, tag = 'input window, operand 0']
    #allocation3 [shape = 's32[2]{0}', space=sflag, size = 0x8, scoped, tag = 'scoped memory for stage_block_nhwc.1']
    #allocation4 [shape = 's32[2]{0}', space=sflag, size = 0x8, scoped, tag = 'scoped memory for stage_block_nhwc.1']
    #allocation5 [shape = 'u8[16384]{0}', space=vmem, size = 0x4000, scoped, tag = 'input window, operand 1']
    #allocation6 [shape = 's32[2]{0}', space=sflag, size = 0x8, scoped, tag = 'scoped memory for stage_block_nhwc.1']
    #allocation7 [shape = 'u8[16384]{0}', space=vmem, size = 0x4000, scoped, tag = 'input window, operand 2']
    #allocation8 [shape = 'u8[65536]{0}', space=vmem, size = 0x10000, scoped, tag = 'output window, operand 0']
    %12 = vsyncpa [#allocation3], 0
    %s13 = scalar_lea.sflag [#allocation3], 1
    %14 = vsyncpa %s13, 0
    %15 = vsyncpa [#allocation6], 0
    %s16 = scalar_lea.sflag [#allocation6], 1
    %17 = vsyncpa %s16, 0
    %18 = vsyncpa [#allocation4], 0
    %s19 = scalar_lea.sflag [#allocation4], 1
    %20 = vsyncpa %s19, 0
    loop: start=0, step=1, limit=10
    $region2: #{stage_block_nhwc.1} parent=1 // loop_pre_header
      _
    $region3: #{stage_block_nhwc.1} parent=1 // loop_header
      %s22 = sphi 0, %s26
      %p23 = scmp.ge.s32.totalorder %s22, 10
      %s29 = sphi 0, %s41
      %s30 = sphi 0, %s37
      %s31 = sphi 0, %s29
      %s32 = sphi 0, %s30
      %s33 = sphi 0, %s31
      %s34 = sphi 0, %s32
      %s46 = sphi 0, %s48
      %s49 = sphi 0, %s46
      %s50 = sphi 0, %s49
      %s66 = sphi 0, %s50
      %s82 = sphi 0, %s84
      %s85 = sphi 0, %s82
      %s86 = sphi 0, %s85
      %s102 = sphi 0, %s86
      %s118 = sphi 0, %s120
      %s121 = sphi 0, %s118
      %s122 = sphi 0, %s121
      %s138 = sphi 0, %s122
      %s142 = sphi 0, %s142
      %s144 = sphi 0, %s142
      %s145 = sphi 0, %s144
      %s159 = sphi 0, %s145
      %s163 = sphi 0, %s163
      %s165 = sphi 0, %s163
      %s166 = sphi 0, %s165
      %s180 = sphi 0, %s166
      %s184 = sphi 0, %s184
      %s186 = sphi 0, %s184
      %s187 = sphi 0, %s186
      %s201 = sphi 0, %s187
      %s205 = sphi 0, %s205
      %s207 = sphi 0, %s205
      %s208 = sphi 0, %s207
      %s222 = sphi 0, %s208
      %s230 = sphi 0, %s232
      %s233 = sphi 0, %s230
      %s234 = sphi 0, %s233
      %s250 = sphi 0, %s234
    $region4: #{stage_block_nhwc.1} parent=1 // loop_header_branch
      %25 = sbr.rel (%p23) target = $region8
    $region5: #{stage_block_nhwc.1} parent=1 // loop_body
      %s27 = ssub.s32 %s22, 1
      %s28 = ssub.s32 %s22, 2
      %s35 = sadd.s32 1, %s30
      %p36 = scmp.ge.s32.totalorder %s35, 4
      %s37 = scalar_select %p36, 0, %s35
      %s38 = sadd.s32 1, %s29
      %s39 = scalar_select %p36, %s38, %s29
      %p40 = scmp.ge.s32.totalorder %s39, 2
      %s41 = scalar_select %p40, 0, %s39
      %s42 = ssub.s32 %s29, %s41
      %s43 = ssub.s32 %s30, %s37
      %s44 = sor.u32 %s42, %s43
      %p45 = scmp.eq.s32.totalorder %s44, 0
      %s47 = sadd.s32 %s46, 1
      %s48 = scalar_select %p45, %s46, %s47
      %p51 = pneg %p45
      %p52 = scmp.eq.s32.totalorder %s22, 7
      %p53 = por %p51, %p52
      %p54 = scmp.ne.s32.totalorder %s46, %s49
      %p55 = scmp.eq.s32.totalorder %s22, 0
      %p56 = por %p54, %p55
      %p57 = scmp.ne.s32.totalorder %s46, %s49
      %p58 = scmp.eq.s32.totalorder %s27, 7
      %p59 = por %p57, %p58
      %p60 = scmp.ne.s32.totalorder %s49, %s50
      %p61 = scmp.eq.s32.totalorder %s27, 0
      %p62 = por %p60, %p61
      %p63 = scmp.ne.s32.totalorder %s49, %s50
      %p64 = scmp.eq.s32.totalorder %s28, 7
      %p65 = por %p63, %p64
      %p67 = scmp.ne.s32.totalorder %s50, %s66
      %p68 = scmp.eq.s32.totalorder %s28, 0
      %p69 = por %p67, %p68
      %s70 = smul.u32 %s30, 4
      %s71 = ssub.s32 %s70, 1
      %p72 = scmp.gt.s32.totalorder %s71, 0
      %s73 = scalar_select %p72, %s71, 0
      %s74 = smul.u32 %s37, 4
      %s75 = ssub.s32 %s74, 1
      %p76 = scmp.gt.s32.totalorder %s75, 0
      %s77 = scalar_select %p76, %s75, 0
      %s78 = ssub.s32 %s29, %s41
      %s79 = ssub.s32 %s73, %s77
      %s80 = sor.u32 %s78, %s79
      %p81 = scmp.eq.s32.totalorder %s80, 0
      %s83 = sadd.s32 %s82, 1
      %s84 = scalar_select %p81, %s82, %s83
      %p87 = pneg %p81
      %p88 = scmp.eq.s32.totalorder %s22, 7
      %p89 = por %p87, %p88
      %p90 = scmp.ne.s32.totalorder %s82, %s85
      %p91 = scmp.eq.s32.totalorder %s22, 0
      %p92 = por %p90, %p91
      %p93 = scmp.ne.s32.totalorder %s82, %s85
      %p94 = scmp.eq.s32.totalorder %s27, 7
      %p95 = por %p93, %p94
      %p96 = scmp.ne.s32.totalorder %s85, %s86
      %p97 = scmp.eq.s32.totalorder %s27, 0
      %p98 = por %p96, %p97
      %p99 = scmp.ne.s32.totalorder %s85, %s86
      %p100 = scmp.eq.s32.totalorder %s28, 7
      %p101 = por %p99, %p100
      %p103 = scmp.ne.s32.totalorder %s86, %s102
      %p104 = scmp.eq.s32.totalorder %s28, 0
      %p105 = por %p103, %p104
      %s106 = smul.u32 %s30, 4
      %s107 = sadd.s32 %s106, 4
      %p108 = scmp.lt.s32.totalorder %s107, 15
      %s109 = scalar_select %p108, %s107, 15
      %s110 = smul.u32 %s37, 4
      %s111 = sadd.s32 %s110, 4
      %p112 = scmp.lt.s32.totalorder %s111, 15
      %s113 = scalar_select %p112, %s111, 15
      %s114 = ssub.s32 %s29, %s41
      %s115 = ssub.s32 %s109, %s113
      %s116 = sor.u32 %s114, %s115
      %p117 = scmp.eq.s32.totalorder %s116, 0
      %s119 = sadd.s32 %s118, 1
      %s120 = scalar_select %p117, %s118, %s119
      %p123 = pneg %p117
      %p124 = scmp.eq.s32.totalorder %s22, 7
      %p125 = por %p123, %p124
      %p126 = scmp.ne.s32.totalorder %s118, %s121
      %p127 = scmp.eq.s32.totalorder %s22, 0
      %p128 = por %p126, %p127
      %p129 = scmp.ne.s32.totalorder %s118, %s121
      %p130 = scmp.eq.s32.totalorder %s27, 7
      %p131 = por %p129, %p130
      %p132 = scmp.ne.s32.totalorder %s121, %s122
      %p133 = scmp.eq.s32.totalorder %s27, 0
      %p134 = por %p132, %p133
      %p135 = scmp.ne.s32.totalorder %s121, %s122
      %p136 = scmp.eq.s32.totalorder %s28, 7
      %p137 = por %p135, %p136
      %p139 = scmp.ne.s32.totalorder %s122, %s138
      %p140 = scmp.eq.s32.totalorder %s28, 0
      %p141 = por %p139, %p140
      %s143 = sadd.s32 %s142, 1
      %p146 = scmp.eq.s32.totalorder %s22, 7
      %p147 = scmp.ne.s32.totalorder %s142, %s144
      %p148 = scmp.eq.s32.totalorder %s22, 0
      %p149 = por %p147, %p148
      %p150 = scmp.ne.s32.totalorder %s142, %s144
      %p151 = scmp.eq.s32.totalorder %s27, 7
      %p152 = por %p150, %p151
      %p153 = scmp.ne.s32.totalorder %s144, %s145
      %p154 = scmp.eq.s32.totalorder %s27, 0
      %p155 = por %p153, %p154
      %p156 = scmp.ne.s32.totalorder %s144, %s145
      %p157 = scmp.eq.s32.totalorder %s28, 7
      %p158 = por %p156, %p157
      %p160 = scmp.ne.s32.totalorder %s145, %s159
      %p161 = scmp.eq.s32.totalorder %s28, 0
      %p162 = por %p160, %p161
      %s164 = sadd.s32 %s163, 1
      %p167 = scmp.eq.s32.totalorder %s22, 7
      %p168 = scmp.ne.s32.totalorder %s163, %s165
      %p169 = scmp.eq.s32.totalorder %s22, 0
      %p170 = por %p168, %p169
      %p171 = scmp.ne.s32.totalorder %s163, %s165
      %p172 = scmp.eq.s32.totalorder %s27, 7
      %p173 = por %p171, %p172
      %p174 = scmp.ne.s32.totalorder %s165, %s166
      %p175 = scmp.eq.s32.totalorder %s27, 0
      %p176 = por %p174, %p175
      %p177 = scmp.ne.s32.totalorder %s165, %s166
      %p178 = scmp.eq.s32.totalorder %s28, 7
      %p179 = por %p177, %p178
      %p181 = scmp.ne.s32.totalorder %s166, %s180
      %p182 = scmp.eq.s32.totalorder %s28, 0
      %p183 = por %p181, %p182
      %s185 = sadd.s32 %s184, 1
      %p188 = scmp.eq.s32.totalorder %s22, 7
      %p189 = scmp.ne.s32.totalorder %s184, %s186
      %p190 = scmp.eq.s32.totalorder %s22, 0
      %p191 = por %p189, %p190
      %p192 = scmp.ne.s32.totalorder %s184, %s186
      %p193 = scmp.eq.s32.totalorder %s27, 7
      %p194 = por %p192, %p193
      %p195 = scmp.ne.s32.totalorder %s186, %s187
      %p196 = scmp.eq.s32.totalorder %s27, 0
      %p197 = por %p195, %p196
      %p198 = scmp.ne.s32.totalorder %s186, %s187
      %p199 = scmp.eq.s32.totalorder %s28, 7
      %p200 = por %p198, %p199
      %p202 = scmp.ne.s32.totalorder %s187, %s201
      %p203 = scmp.eq.s32.totalorder %s28, 0
      %p204 = por %p202, %p203
      %s206 = sadd.s32 %s205, 1
      %p209 = scmp.eq.s32.totalorder %s22, 7
      %p210 = scmp.ne.s32.totalorder %s205, %s207
      %p211 = scmp.eq.s32.totalorder %s22, 0
      %p212 = por %p210, %p211
      %p213 = scmp.ne.s32.totalorder %s205, %s207
      %p214 = scmp.eq.s32.totalorder %s27, 7
      %p215 = por %p213, %p214
      %p216 = scmp.ne.s32.totalorder %s207, %s208
      %p217 = scmp.eq.s32.totalorder %s27, 0
      %p218 = por %p216, %p217
      %p219 = scmp.ne.s32.totalorder %s207, %s208
      %p220 = scmp.eq.s32.totalorder %s28, 7
      %p221 = por %p219, %p220
      %p223 = scmp.ne.s32.totalorder %s208, %s222
      %p224 = scmp.eq.s32.totalorder %s28, 0
      %p225 = por %p223, %p224
      %s226 = ssub.s32 %s29, %s41
      %s227 = ssub.s32 %s30, %s37
      %s228 = sor.u32 %s226, %s227
      %p229 = scmp.eq.s32.totalorder %s228, 0
      %s231 = sadd.s32 %s230, 1
      %s232 = scalar_select %p229, %s230, %s231
      %p235 = pneg %p229
      %p236 = scmp.eq.s32.totalorder %s22, 7
      %p237 = por %p235, %p236
      %p238 = scmp.ne.s32.totalorder %s230, %s233
      %p239 = scmp.eq.s32.totalorder %s22, 0
      %p240 = por %p238, %p239
      %p241 = scmp.ne.s32.totalorder %s230, %s233
      %p242 = scmp.eq.s32.totalorder %s27, 7
      %p243 = por %p241, %p242
      %p244 = scmp.ne.s32.totalorder %s233, %s234
      %p245 = scmp.eq.s32.totalorder %s27, 0
      %p246 = por %p244, %p245
      %p247 = scmp.ne.s32.totalorder %s233, %s234
      %p248 = scmp.eq.s32.totalorder %s28, 7
      %p249 = por %p247, %p248
      %p251 = scmp.ne.s32.totalorder %s234, %s250
      %p252 = scmp.eq.s32.totalorder %s28, 0
      %p253 = por %p251, %p252
      %p254 = scmp.le.s32.totalorder 1, %s22
      %p255 = scmp.lt.s32.totalorder %s22, 9
      %p256 = pnand %p254, %p255
      %p257 = pneg %p256
      // Predicated region
      $region9: #{stage_block_nhwc.1} parent=5 // pred_check
        _
      $region10: #{stage_block_nhwc.1} parent=5 // pred_check_branch
        %259 = sbr.rel (%p256) target = $region12
      $region11: #{stage_block_nhwc.1} parent=5 // pred_region
        %s260 = ssub.s32 %s22, 1
        // Predicated region
        $region13: #{stage_block_nhwc.1} parent=11 // pred_check
          %p261 = pneg %p155
        $region14: #{stage_block_nhwc.1} parent=11 // pred_check_branch
          %263 = sbr.rel (%p261) target = $region16
        $region15: #{stage_block_nhwc.1} parent=11 // pred_region
          _
        $region16: #{stage_block_nhwc.1} parent=11 // pred_fallthru
          _
        // Predicated region
        $region17: #{stage_block_nhwc.1} parent=11 // pred_check
          %p264 = pneg %p176
        $region18: #{stage_block_nhwc.1} parent=11 // pred_check_branch
          %266 = sbr.rel (%p264) target = $region20
        $region19: #{stage_block_nhwc.1} parent=11 // pred_region
          _
        $region20: #{stage_block_nhwc.1} parent=11 // pred_fallthru
          _
        // Predicated region
        $region21: #{stage_block_nhwc.1} parent=11 // pred_check
          %p267 = pneg %p197
        $region22: #{stage_block_nhwc.1} parent=11 // pred_check_branch
          %269 = sbr.rel (%p267) target = $region24
        $region23: #{stage_block_nhwc.1} parent=11 // pred_region
          _
        $region24: #{stage_block_nhwc.1} parent=11 // pred_fallthru
          _
        // Predicated region
        $region25: #{stage_block_nhwc.1} parent=11 // pred_check
          %p270 = pneg %p218
        $region26: #{stage_block_nhwc.1} parent=11 // pred_check_branch
          %272 = sbr.rel (%p270) target = $region28
        $region27: #{stage_block_nhwc.1} parent=11 // pred_region
          _
        $region28: #{stage_block_nhwc.1} parent=11 // pred_fallthru
          _
      $region12: #{stage_block_nhwc.1} parent=5 // pred_fallthru
        _
      %p273 = scmp.lt.s32.totalorder %s22, 8
      // Predicated region
      $region29: #{stage_block_nhwc.1} parent=5 // pred_check
        %p274 = pneg %p273
      $region30: #{stage_block_nhwc.1} parent=5 // pred_check_branch
        %276 = sbr.rel (%p274) target = $region32
      $region31: #{stage_block_nhwc.1} parent=5 // pred_region
        // Predicated region
        $region33: #{stage_block_nhwc.1} parent=31 // pred_check
          %p277 = pneg %p56
        $region34: #{stage_block_nhwc.1} parent=31 // pred_check_branch
          %279 = sbr.rel (%p277) target = $region36
        $region35: #{stage_block_nhwc.1} parent=31 // pred_region
          %s280 = sand.u32 %s46, 1
          %s281 = scalar_lea.sflag [#allocation3], %s280
          %s282 = sand.u32 %s46, 1
          %s283 = smul.addr %s282, 64
          %s284 = scalar_lea.vmem [#allocation2], %s283
          %s285 = smul.u32 4, %s30
          %s287 = ssub.s32 1024, 1024
          %288 = vsyncadd %s281, %s287
          %s289 = smul.addr %s285, 2
          %s290 = smul.addr %s29, 32
          %s291 = sadd.s32 %s289, %s290
          %s292 = smul.addr %s291, 128
          %s293 = scalar_lea.hbm %s0, %s292
          %s294 = sshll.u32 %s284, 4
          %s295 = int_to_ptr.vmem [resolvable:$true] %s294
          %300 = dma.hbm_to_vmem [thread:$0]  %s293, 1024, %s295, %s281, 128, 128, 8
        $region36: #{stage_block_nhwc.1} parent=31 // pred_fallthru
          _
        // Predicated region
        $region37: #{stage_block_nhwc.1} parent=31 // pred_check
          %p301 = pneg %p92
        $region38: #{stage_block_nhwc.1} parent=31 // pred_check_branch
          %303 = sbr.rel (%p301) target = $region40
        $region39: #{stage_block_nhwc.1} parent=31 // pred_region
          %s304 = sand.u32 %s22, 1
          %s305 = scalar_lea.sflag [#allocation6], %s304
          %s306 = sand.u32 %s82, 1
          %s307 = smul.addr %s306, 16
          %s308 = scalar_lea.vmem [#allocation5], %s307
          %s309 = smul.u32 %s30, 4
          %s310 = ssub.s32 %s309, 1
          %p311 = scmp.gt.s32.totalorder %s310, 0
          %s312 = scalar_select %p311, %s310, 0
          %s314 = ssub.s32 256, 256
          %315 = vsyncadd %s305, %s314
          %s316 = smul.addr %s312, 2
          %s317 = smul.addr %s29, 32
          %s318 = sadd.s32 %s316, %s317
          %s319 = smul.addr %s318, 128
          %s320 = scalar_lea.hbm %s1, %s319
          %s321 = sshll.u32 %s308, 4
          %s322 = int_to_ptr.vmem [resolvable:$true] %s321
          %327 = dma.hbm_to_vmem [thread:$0]  %s320, 256, %s322, %s305, 128, 128, 8
        $region40: #{stage_block_nhwc.1} parent=31 // pred_fallthru
          _
        // Predicated region
        $region41: #{stage_block_nhwc.1} parent=31 // pred_check
          %p328 = pneg %p128
        $region42: #{stage_block_nhwc.1} parent=31 // pred_check_branch
          %330 = sbr.rel (%p328) target = $region44
        $region43: #{stage_block_nhwc.1} parent=31 // pred_region
          %s331 = sand.u32 %s22, 1
          %s332 = scalar_lea.sflag [#allocation6], %s331
          %s333 = sand.u32 %s118, 1
          %s334 = smul.addr %s333, 16
          %s335 = scalar_lea.vmem [#allocation7], %s334
          %s336 = smul.u32 %s30, 4
          %s337 = sadd.s32 %s336, 4
          %p338 = scmp.lt.s32.totalorder %s337, 15
          %s339 = scalar_select %p338, %s337, 15
          %s341 = ssub.s32 256, 256
          %342 = vsyncadd %s332, %s341
          %s343 = smul.addr %s339, 2
          %s344 = smul.addr %s29, 32
          %s345 = sadd.s32 %s343, %s344
          %s346 = smul.addr %s345, 128
          %s347 = scalar_lea.hbm %s2, %s346
          %s348 = sshll.u32 %s335, 4
          %s349 = int_to_ptr.vmem [resolvable:$true] %s348
          %354 = dma.hbm_to_vmem [thread:$0]  %s347, 256, %s349, %s332, 128, 128, 8
        $region44: #{stage_block_nhwc.1} parent=31 // pred_fallthru
          _
      $region32: #{stage_block_nhwc.1} parent=5 // pred_fallthru
        _
      %p355 = scmp.le.s32.totalorder 1, %s22
      %p356 = scmp.lt.s32.totalorder %s22, 9
      %p357 = pnand %p355, %p356
      %p358 = pneg %p357
      // Predicated region
      $region45: #{stage_block_nhwc.1} parent=5 // pred_check
        _
      $region46: #{stage_block_nhwc.1} parent=5 // pred_check_branch
        %360 = sbr.rel (%p357) target = $region48
      $region47: #{stage_block_nhwc.1} parent=5 // pred_region
        %s361 = ssub.s32 %s22, 1
        %s362 = sand.u32 %s49, 1
        %s363 = scalar_lea.sflag [#allocation3], %s362
        %s364 = sand.u32 %s49, 1
        %s365 = smul.addr %s364, 64
        %s366 = scalar_lea.vmem [#allocation2], %s365
        // Predicated region
        $region49: #{stage_block_nhwc.1} parent=47 // pred_check
          %p367 = pneg %p62
        $region50: #{stage_block_nhwc.1} parent=47 // pred_check_branch
          %369 = sbr.rel (%p367) target = $region52
        $region51: #{stage_block_nhwc.1} parent=47 // pred_region
          %370 = dma.done %s363, 1024
        $region52: #{stage_block_nhwc.1} parent=47 // pred_fallthru
          _
        %s371 = sand.u32 %s27, 1
        %s372 = scalar_lea.sflag [#allocation6], %s371
        %s373 = sand.u32 %s85, 1
        %s374 = smul.addr %s373, 16
        %s375 = scalar_lea.vmem [#allocation5], %s374
        // Predicated region
        $region53: #{stage_block_nhwc.1} parent=47 // pred_check
          %p376 = pneg %p98
        $region54: #{stage_block_nhwc.1} parent=47 // pred_check_branch
          %378 = sbr.rel (%p376) target = $region56
        $region55: #{stage_block_nhwc.1} parent=47 // pred_region
          %379 = dma.done %s372, 256
        $region56: #{stage_block_nhwc.1} parent=47 // pred_fallthru
          _
        %s380 = sand.u32 %s27, 1
        %s381 = scalar_lea.sflag [#allocation6], %s380
        %s382 = sand.u32 %s121, 1
        %s383 = smul.addr %s382, 16
        %s384 = scalar_lea.vmem [#allocation7], %s383
        // Predicated region
        $region57: #{stage_block_nhwc.1} parent=47 // pred_check
          %p385 = pneg %p134
        $region58: #{stage_block_nhwc.1} parent=47 // pred_check_branch
          %387 = sbr.rel (%p385) target = $region60
        $region59: #{stage_block_nhwc.1} parent=47 // pred_region
          %388 = dma.done %s381, 256
        $region60: #{stage_block_nhwc.1} parent=47 // pred_fallthru
          _
        %s389 = sand.u32 %s49, 1
        %s390 = scalar_lea.sflag [#allocation3], %s389
        %s391 = sand.u32 %s49, 1
        %s392 = smul.addr %s391, 64
        %s393 = scalar_lea.vmem [#allocation2], %s392
        %p394 = pneg %p62
        %p395 = pneg %p59
        %s396 = sand.u32 %s27, 1
        %s397 = scalar_lea.sflag [#allocation6], %s396
        %s398 = sand.u32 %s85, 1
        %s399 = smul.addr %s398, 16
        %s400 = scalar_lea.vmem [#allocation5], %s399
        %p401 = pneg %p98
        %p402 = pneg %p95
        %s403 = sand.u32 %s27, 1
        %s404 = scalar_lea.sflag [#allocation6], %s403
        %s405 = sand.u32 %s121, 1
        %s406 = smul.addr %s405, 16
        %s407 = scalar_lea.vmem [#allocation7], %s406
        %p408 = pneg %p134
        %p409 = pneg %p131
        %p410 = pneg %p155
        %p411 = pneg %p152
        %p412 = pneg %p176
        %p413 = pneg %p173
        %p414 = pneg %p197
        %p415 = pneg %p194
        %p416 = pneg %p218
        %p417 = pneg %p215
        %p418 = pneg %p246
        %p419 = pneg %p243
        %s420 = sand.u32 %s233, 1
        %s421 = scalar_lea.sflag [#allocation4], %s420
        %s422 = sand.u32 %s233, 1
        %s423 = smul.addr %s422, 64
        %s424 = scalar_lea.vmem [#allocation8], %s423
        %s425 = smul.u32 4, %s32
        %s426 = smul.u32 %s32, 4
        %s427 = ssub.s32 %s426, 1
        %p428 = scmp.gt.s32.totalorder %s427, 0
        %s429 = scalar_select %p428, %s427, 0
        %s430 = smul.u32 %s32, 4
        %s431 = sadd.s32 %s430, 4
        %p432 = scmp.lt.s32.totalorder %s431, 15
        %s433 = scalar_select %p432, %s431, 15
        %s434 = smul.u32 4, %s32
        %v438 = vld [vmem:[%s375] sm:$0xff]
        %v439 = vld [vmem:[%s375 + $0x8] sm:$0xff]
        %v440 = vld [vmem:[%s366] sm:$0xff]
        %v441 = vld [vmem:[%s366 + $0x8] sm:$0xff]
        %v442 = vld [vmem:[%s366 + $0x10] sm:$0xff]
        %v443 = vld [vmem:[%s366 + $0x18] sm:$0xff]
        %v444 = vld [vmem:[%s366 + $0x20] sm:$0xff]
        %v445 = vld [vmem:[%s366 + $0x28] sm:$0xff]
        %v446 = vld [vmem:[%s366 + $0x30] sm:$0xff]
        %v447 = vld [vmem:[%s366 + $0x38] sm:$0xff]
        %v448 = vld [vmem:[%s384] sm:$0xff]
        %v449 = vld [vmem:[%s384 + $0x8] sm:$0xff]
        %v450 = vpack.c.bf16 %v439, %v438
        %v451 = vpack.c.bf16 %v441, %v440
        %v452 = vpack.c.bf16 %v443, %v442
        %v453 = vpack.c.bf16 %v445, %v444
        %v454 = vpack.c.bf16 %v447, %v446
        %v455 = vpack.c.bf16 %v449, %v448
        %v456 = vld [vmem:[%s3] sm:$0xf]
        %v457 = vld [vmem:[%s3 + $0x4] sm:$0xf]
        %v458 = vld [vmem:[%s3 + $0x8] sm:$0xf]
        %v459 = vld [vmem:[%s3 + $0xc] sm:$0xf]
        %v460 = vld [vmem:[%s3 + $0x10] sm:$0xf]
        %v461 = vld [vmem:[%s3 + $0x14] sm:$0xf]
        %v462 = vld [vmem:[%s3 + $0x18] sm:$0xf]
        %v463 = vld [vmem:[%s3 + $0x1c] sm:$0xf]
        %v464 = vld [vmem:[%s4] sm:$0x1]
        %v466 = vlaneseq
        %v467 = vshrl.u32 %v466, 7
        %v468 = vsub.s32 0, %v467
        %v469 = vrot.slane %v464, %v468
        %v479 = vunpack.c.l.b16 %v456
        %v480 = vunpack.c.l.b16 %v457
        %v481 = vunpack.c.l.b16 %v458
        %v482 = vunpack.c.l.b16 %v459
        %v483 = vunpack.c.l.b16 %v460
        %v484 = vunpack.c.l.b16 %v461
        %v485 = vunpack.c.l.b16 %v462
        %v486 = vunpack.c.l.b16 %v463
        %v487 = vpack.c.b16 %v480, %v479
        %v488 = vpack.c.b16 %v482, %v481
        %v489 = vpack.c.b16 %v484, %v483
        %v490 = vpack.c.b16 %v486, %v485
        %vm495 = vcmask 523264
        %v497 = vsel %vm495, %v450, 0
        %v500 = vsel %vm495, %v451, 0
        %v503 = vsel %vm495, %v452, 0
        %v506 = vsel %vm495, %v453, 0
        %v509 = vsel %vm495, %v454, 0
        %v512 = vsel %vm495, %v455, 0
        %514 = vmatprep.subr.bf16.mxu0 0
        %515 = vmatpush1.bf16.msra.mxu0 %v487
        %516 = vmatprep.subr.bf16.mxu0 0
        %517 = vmatpush1.bf16.msra.mxu0 %v488
        %518 = vmatprep.subr.bf16.mxu0 0
        %519 = vmatpush1.bf16.msra.mxu0 %v489
        %520 = vmatprep.subr.bf16.mxu0 0
        %521 = vmatpush1.bf16.msra.mxu0 %v490
        %522 = vmatprep.subr.bf16.mxu0 0
        %523 = vmatpush1.bf16.msra.mxu0 0
        %524 = vmatprep.subr.bf16.mxu0 0
        %525 = vmatpush1.bf16.msra.mxu0 0
        %526 = vmatprep.subr.bf16.mxu0 0
        %527 = vmatpush1.bf16.msra.mxu0 0
        %528 = vmatprep.subr.bf16.mxu0 0
        %529 = vmatpush1.bf16.msra.mxu0 0
        %530 = vmatprep.subr.bf16.mxu0 0
        %531 = vmatpush1.bf16.msra.mxu0 0
        %532 = vmatprep.subr.bf16.mxu0 0
        %533 = vmatpush1.bf16.msra.mxu0 0
        %534 = vmatprep.subr.bf16.mxu0 0
        %535 = vmatpush1.bf16.msra.mxu0 0
        %536 = vmatprep.subr.bf16.mxu0 0
        %537 = vmatpush1.bf16.msra.mxu0 0
        %538 = vmatprep.subr.bf16.mxu0 0
        %539 = vmatpush1.bf16.msra.mxu0 0
        %540 = vmatprep.subr.bf16.mxu0 0
        %541 = vmatpush1.bf16.msra.mxu0 0
        %542 = vmatprep.subr.bf16.mxu0 0
        %543 = vmatpush1.bf16.msra.mxu0 0
        %544 = vmatprep.subr.bf16.mxu0 0
        %545 = vmatpush1.bf16.msra.mxu0 0
        %546 = vmatprep.mubr.bf16.mxu0 0
        %547 = vmatmul.mubr.bf16.gmra.mrb[0].mxu0 %v497
        %v548 = vpop.f32.mrb[0].mxu0
        %v549 = vadd.f32 %v469, %v548
        %v550 = vpop.f32.mrb[0].mxu0
        %v551 = vpop.f32.mrb[0].mxu0
        %v552 = vadd.f32 %v469, %v551
        %v553 = vpop.f32.mrb[0].mxu0
        %554 = vmatprep.mubr.bf16.mxu0 0
        %555 = vmatmul.mubr.bf16.gmra.mrb[0].mxu0 %v500
        %v556 = vpop.f32.mrb[0].mxu0
        %v557 = vadd.f32 %v469, %v556
        %v558 = vpop.f32.mrb[0].mxu0
        %v559 = vpop.f32.mrb[0].mxu0
        %v560 = vadd.f32 %v469, %v559
        %v561 = vpop.f32.mrb[0].mxu0
        %562 = vmatprep.mubr.bf16.mxu0 0
        %563 = vmatmul.mubr.bf16.gmra.mrb[0].mxu0 %v503
        %v564 = vpop.f32.mrb[0].mxu0
        %v565 = vadd.f32 %v469, %v564
        %v566 = vpop.f32.mrb[0].mxu0
        %v567 = vpop.f32.mrb[0].mxu0
        %v568 = vadd.f32 %v469, %v567
        %v569 = vpop.f32.mrb[0].mxu0
        %570 = vmatprep.mubr.bf16.mxu0 0
        %571 = vmatmul.mubr.bf16.gmra.mrb[0].mxu0 %v506
        %v572 = vpop.f32.mrb[0].mxu0
        %v573 = vadd.f32 %v469, %v572
        %v574 = vpop.f32.mrb[0].mxu0
        %v575 = vpop.f32.mrb[0].mxu0
        %v576 = vadd.f32 %v469, %v575
        %v577 = vpop.f32.mrb[0].mxu0
        %578 = vmatprep.mubr.bf16.mxu0 0
        %579 = vmatmul.mubr.bf16.gmra.mrb[0].mxu0 %v509
        %v580 = vpop.f32.mrb[0].mxu0
        %v581 = vadd.f32 %v469, %v580
        %v582 = vpop.f32.mrb[0].mxu0
        %v583 = vpop.f32.mrb[0].mxu0
        %v584 = vadd.f32 %v469, %v583
        %v585 = vpop.f32.mrb[0].mxu0
        %586 = vmatprep.mubr.bf16.mxu0 0
        %587 = vmatmul.mubr.bf16.gmra.mrb[0].mxu0 %v512
        %v588 = vpop.f32.mrb[0].mxu0
        %v589 = vadd.f32 %v469, %v588
        %v590 = vpop.f32.mrb[0].mxu0
        %v591 = vpop.f32.mrb[0].mxu0
        %v592 = vadd.f32 %v469, %v591
        %v593 = vpop.f32.mrb[0].mxu0
        %594 = vdwg.mxu0
        %v595 = vmul.f32 %v549, 0.1
        %v596 = vmul.f32 %v552, 0.1
        %v597 = vmul.f32 %v557, 0.1
        %v598 = vmul.f32 %v560, 0.1
        %v599 = vmul.f32 %v565, 0.1
        %v600 = vmul.f32 %v568, 0.1
        %v601 = vmul.f32 %v573, 0.1
        %v602 = vmul.f32 %v576, 0.1
        %v603 = vmul.f32 %v581, 0.1
        %v604 = vmul.f32 %v584, 0.1
        %v605 = vmul.f32 %v589, 0.1
        %v606 = vmul.f32 %v592, 0.1
        %v607 = vmax.f32 %v549, %v595
        %v608 = vmax.f32 %v552, %v596
        %v609 = vmax.f32 %v557, %v597
        %v610 = vmax.f32 %v560, %v598
        %v611 = vmax.f32 %v565, %v599
        %v612 = vmax.f32 %v568, %v600
        %v613 = vmax.f32 %v573, %v601
        %v614 = vmax.f32 %v576, %v602
        %v615 = vmax.f32 %v581, %v603
        %v616 = vmax.f32 %v584, %v604
        %v617 = vmax.f32 %v589, %v605
        %v618 = vmax.f32 %v592, %v606
        %v619 = vlaneseq
        %v620 = vshrl.u32 %v619, 7
        %v621 = vadd.s32 %v620, 8
        %v622 = vadd.s32 %v620, 16
        %v623 = vadd.s32 %v620, 24
        %v624 = vadd.s32 %v620, 32
        %v625 = vadd.s32 %v620, 40
        %v626 = vadd.s32 %v620, 48
        %v627 = vadd.s32 %v620, 56
        %v628 = vadd.s32 %v620, 64
        %v629 = vadd.s32 %v620, 72
        %v630 = vadd.s32 %v620, 80
        %v631 = vadd.s32 %v620, 88
        %vm632 = vcmp.ge.s32.totalorder %v620, 16
        %vm633 = vcmp.ge.s32.totalorder %v621, 16
        %vm634 = vcmp.ge.s32.totalorder %v622, 16
        %vm635 = vcmp.ge.s32.totalorder %v623, 16
        %vm636 = vcmp.ge.s32.totalorder %v624, 16
        %vm637 = vcmp.ge.s32.totalorder %v625, 16
        %vm638 = vcmp.ge.s32.totalorder %v626, 16
        %vm639 = vcmp.ge.s32.totalorder %v627, 16
        %vm640 = vcmp.ge.s32.totalorder %v628, 16
        %vm641 = vcmp.ge.s32.totalorder %v629, 16
        %vm642 = vcmp.ge.s32.totalorder %v630, 16
        %vm643 = vcmp.ge.s32.totalorder %v631, 16
        %p644 = scmp.gt.s32.totalorder %s32, 0
        %s645 = scalar_select %p644, 1, 0
        %v646 = vstv %s645
        %vm647 = vcmp.eq.s32.totalorder %v646, 1
        %vm648 = vmor %vm632, %vm647
        %vm649 = vmor %vm633, %vm647
        %vm650 = vmor %vm634, %vm647
        %vm651 = vmor %vm635, %vm647
        %vm652 = vmor %vm636, %vm647
        %vm653 = vmor %vm637, %vm647
        %vm654 = vmor %vm638, %vm647
        %vm655 = vmor %vm639, %vm647
        %vm656 = vmor %vm640, %vm647
        %vm657 = vmor %vm641, %vm647
        %vm658 = vmor %vm642, %vm647
        %vm659 = vmor %vm643, %vm647
        %vm660 = vcmp.lt.s32.totalorder %v620, 80
        %vm661 = vcmp.lt.s32.totalorder %v621, 80
        %vm662 = vcmp.lt.s32.totalorder %v622, 80
        %vm663 = vcmp.lt.s32.totalorder %v623, 80
        %vm664 = vcmp.lt.s32.totalorder %v624, 80
        %vm665 = vcmp.lt.s32.totalorder %v625, 80
        %vm666 = vcmp.lt.s32.totalorder %v626, 80
        %vm667 = vcmp.lt.s32.totalorder %v627, 80
        %vm668 = vcmp.lt.s32.totalorder %v628, 80
        %vm669 = vcmp.lt.s32.totalorder %v629, 80
        %vm670 = vcmp.lt.s32.totalorder %v630, 80
        %vm671 = vcmp.lt.s32.totalorder %v631, 80
        %p672 = scmp.lt.s32.totalorder %s32, 3
        %s673 = scalar_select %p672, 1, 0
        %v674 = vstv %s673
        %vm675 = vcmp.eq.s32.totalorder %v674, 1
        %vm676 = vmor %vm660, %vm675
        %vm677 = vmor %vm661, %vm675
        %vm678 = vmor %vm662, %vm675
        %vm679 = vmor %vm663, %vm675
        %vm680 = vmor %vm664, %vm675
        %vm681 = vmor %vm665, %vm675
        %vm682 = vmor %vm666, %vm675
        %vm683 = vmor %vm667, %vm675
        %vm684 = vmor %vm668, %vm675
        %vm685 = vmor %vm669, %vm675
        %vm686 = vmor %vm670, %vm675
        %vm687 = vmor %vm671, %vm675
        %vm688 = vmand %vm648, %vm676
        %vm689 = vmand %vm649, %vm677
        %vm690 = vmand %vm650, %vm678
        %vm691 = vmand %vm651, %vm679
        %vm692 = vmand %vm652, %vm680
        %vm693 = vmand %vm653, %vm681
        %vm694 = vmand %vm654, %vm682
        %vm695 = vmand %vm655, %vm683
        %vm696 = vmand %vm656, %vm684
        %vm697 = vmand %vm657, %vm685
        %vm698 = vmand %vm658, %vm686
        %vm699 = vmand %vm659, %vm687
        %v700 = vpack.c.bf16 %v608, %v607
        %v701 = vpack.c.bf16 %v610, %v609
        %v702 = vpack.c.bf16 %v612, %v611
        %v703 = vpack.c.bf16 %v614, %v613
        %v704 = vpack.c.bf16 %v616, %v615
        %v705 = vpack.c.bf16 %v618, %v617
        %v706 = vsel %vm688, 1, 0
        %v707 = vsel %vm689, 1, 0
        %v708 = vsel %vm690, 1, 0
        %v709 = vsel %vm691, 1, 0
        %v710 = vsel %vm692, 1, 0
        %v711 = vsel %vm693, 1, 0
        %v712 = vsel %vm694, 1, 0
        %v713 = vsel %vm695, 1, 0
        %v714 = vsel %vm696, 1, 0
        %v715 = vsel %vm697, 1, 0
        %v716 = vsel %vm698, 1, 0
        %v717 = vsel %vm699, 1, 0
        %vm718 = vcmp.eq.s32.totalorder %v706, 1
        %vm719 = vcmp.eq.s32.totalorder %v707, 1
        %vm720 = vcmp.eq.s32.totalorder %v708, 1
        %vm721 = vcmp.eq.s32.totalorder %v709, 1
        %vm722 = vcmp.eq.s32.totalorder %v710, 1
        %vm723 = vcmp.eq.s32.totalorder %v711, 1
        %vm724 = vcmp.eq.s32.totalorder %v712, 1
        %vm725 = vcmp.eq.s32.totalorder %v713, 1
        %vm726 = vcmp.eq.s32.totalorder %v714, 1
        %vm727 = vcmp.eq.s32.totalorder %v715, 1
        %vm728 = vcmp.eq.s32.totalorder %v716, 1
        %vm729 = vcmp.eq.s32.totalorder %v717, 1
        %vm730 = vmpackc.low %vm718, %vm718
        %vm731 = vmpackc.low %vm719, %vm719
        %vm732 = vmpackc.low %vm720, %vm720
        %vm733 = vmpackc.low %vm721, %vm721
        %vm734 = vmpackc.low %vm722, %vm722
        %vm735 = vmpackc.low %vm723, %vm723
        %vm736 = vmpackc.low %vm724, %vm724
        %vm737 = vmpackc.low %vm725, %vm725
        %vm738 = vmpackc.low %vm726, %vm726
        %vm739 = vmpackc.low %vm727, %vm727
        %vm740 = vmpackc.low %vm728, %vm728
        %vm741 = vmpackc.low %vm729, %vm729
        %v742 = vsel %vm730, 65537, 0
        %v743 = vsel %vm731, 65537, 0
        %v744 = vsel %vm732, 65537, 0
        %v745 = vsel %vm733, 65537, 0
        %v746 = vsel %vm734, 65537, 0
        %v747 = vsel %vm735, 65537, 0
        %v748 = vsel %vm736, 65537, 0
        %v749 = vsel %vm737, 65537, 0
        %v750 = vsel %vm738, 65537, 0
        %v751 = vsel %vm739, 65537, 0
        %v752 = vsel %vm740, 65537, 0
        %v753 = vsel %vm741, 65537, 0
        %v754 = vunpack.c.l.b16 %v742
        %v755 = vunpack.c.l.b16 %v743
        %v756 = vunpack.c.l.b16 %v744
        %v757 = vunpack.c.l.b16 %v745
        %v758 = vunpack.c.l.b16 %v746
        %v759 = vunpack.c.l.b16 %v747
        %v760 = vunpack.c.l.b16 %v748
        %v761 = vunpack.c.l.b16 %v749
        %v762 = vunpack.c.l.b16 %v750
        %v763 = vunpack.c.l.b16 %v751
        %v764 = vunpack.c.l.b16 %v752
        %v765 = vunpack.c.l.b16 %v753
        %v766 = vpack.c.b16 %v755, %v754
        %v767 = vpack.c.b16 %v757, %v756
        %v768 = vpack.c.b16 %v759, %v758
        %v769 = vpack.c.b16 %v761, %v760
        %v770 = vpack.c.b16 %v763, %v762
        %v771 = vpack.c.b16 %v765, %v764
        %vm772 = vcmp.ne.s16.totalorder %v766, 0
        %vm773 = vcmp.ne.s16.totalorder %v767, 0
        %vm774 = vcmp.ne.s16.totalorder %v768, 0
        %vm775 = vcmp.ne.s16.totalorder %v769, 0
        %vm776 = vcmp.ne.s16.totalorder %v770, 0
        %vm777 = vcmp.ne.s16.totalorder %v771, 0
        %v778 = vsel %vm772, %v700, 0
        %v779 = vsel %vm773, %v701, 0
        %v780 = vsel %vm774, %v702, 0
        %v781 = vsel %vm775, %v703, 0
        %v782 = vsel %vm776, %v704, 0
        %v783 = vsel %vm777, %v705, 0
        %v785 = vshrl.u32 %v778, 16
        %v787 = vrot.slane %v785, 7
        %v788 = vshll.u32 %v778, 16
        %v790 = vor.u32 %v787, %v788
        %v792 = vshrl.u32 %v779, 16
        %v794 = vrot.slane %v792, 7
        %v795 = vshll.u32 %v779, 16
        %v797 = vor.u32 %v794, %v795
        %v799 = vshrl.u32 %v780, 16
        %v801 = vrot.slane %v799, 7
        %v802 = vshll.u32 %v780, 16
        %v804 = vor.u32 %v801, %v802
        %v806 = vshrl.u32 %v781, 16
        %v808 = vrot.slane %v806, 7
        %v809 = vshll.u32 %v781, 16
        %v811 = vor.u32 %v808, %v809
        %v813 = vshrl.u32 %v782, 16
        %v815 = vrot.slane %v813, 7
        %v816 = vshll.u32 %v782, 16
        %v818 = vor.u32 %v815, %v816
        %v820 = vshrl.u32 %v783, 16
        %v822 = vrot.slane %v820, 7
        %v823 = vshll.u32 %v783, 16
        %v825 = vor.u32 %v822, %v823
        %vm832 = vcmask 1040384
        %vm833 = vsmask.f32 256
        %vm834 = vmand %vm832, %vm833
        %v835 = vsel %vm834, 0, %v790
        %v836 = vsel %vm834, 0, %v797
        %v837 = vsel %vm834, 0, %v804
        %v838 = vsel %vm834, 0, %v811
        %v839 = vsel %vm834, 0, %v818
        %v840 = vsel %vm834, 0, %v825
        %v841 = vrot.slane %v788, 1
        %v842 = vor.u32 %v785, %v841
        %v843 = vrot.slane %v795, 1
        %v844 = vor.u32 %v792, %v843
        %v845 = vrot.slane %v802, 1
        %v846 = vor.u32 %v799, %v845
        %v847 = vrot.slane %v809, 1
        %v848 = vor.u32 %v806, %v847
        %v849 = vrot.slane %v816, 1
        %v850 = vor.u32 %v813, %v849
        %v851 = vrot.slane %v823, 1
        %v852 = vor.u32 %v820, %v851
        %vm859 = vcmask 1047552
        %vm860 = vsmask.f32 7424
        %vm861 = vmand %vm859, %vm860
        %v862 = vsel %vm861, %v842, 0
        %v863 = vsel %vm861, %v844, 0
        %v864 = vsel %vm861, %v846, 0
        %v865 = vsel %vm861, %v848, 0
        %v866 = vsel %vm861, %v850, 0
        %v867 = vsel %vm861, %v852, 0
        %874 = vrot.lane.b32.xlu0 %v778, 32
        %v875 = vpop.permute.xlu0 %874
        %876 = vrot.lane.b32.xlu0 %v779, 32
        %v877 = vpop.permute.xlu0 %876
        %878 = vrot.lane.b32.xlu0 %v780, 32
        %v879 = vpop.permute.xlu0 %878
        %880 = vrot.lane.b32.xlu0 %v781, 32
        %v881 = vpop.permute.xlu0 %880
        %882 = vrot.lane.b32.xlu0 %v782, 32
        %v883 = vpop.permute.xlu0 %882
        %884 = vrot.lane.b32.xlu0 %v783, 32
        %v885 = vpop.permute.xlu0 %884
        %892 = vrot.lane.b32.xlu0 %v862, 64
        %v893 = vpop.permute.xlu0 %892
        %894 = vrot.lane.b32.xlu0 %v863, 64
        %v895 = vpop.permute.xlu0 %894
        %896 = vrot.lane.b32.xlu0 %v864, 64
        %v897 = vpop.permute.xlu0 %896
        %898 = vrot.lane.b32.xlu0 %v865, 64
        %v899 = vpop.permute.xlu0 %898
        %900 = vrot.lane.b32.xlu0 %v866, 64
        %v901 = vpop.permute.xlu0 %900
        %902 = vrot.lane.b32.xlu0 %v867, 64
        %v903 = vpop.permute.xlu0 %902
        %vm904 = vcmask 261120
        %v907 = vsel %vm904, %v835, %v875
        %v910 = vsel %vm904, %v836, %v877
        %v913 = vsel %vm904, %v837, %v879
        %v916 = vsel %vm904, %v838, %v881
        %v919 = vsel %vm904, %v839, %v883
        %v922 = vsel %vm904, %v840, %v885
        %v924 = vsel %vm495, %v907, %v893
        %v926 = vsel %vm495, %v910, %v895
        %v928 = vsel %vm495, %v913, %v897
        %v930 = vsel %vm495, %v916, %v899
        %v932 = vsel %vm495, %v919, %v901
        %v934 = vsel %vm495, %v922, %v903
        %939 = vrot.lane.b32.xlu0 %v926, 96
        %v940 = vpop.permute.xlu0 %939
        %941 = vrot.lane.b32.xlu0 %v928, 96
        %v942 = vpop.permute.xlu0 %941
        %943 = vrot.lane.b32.xlu0 %v930, 96
        %v944 = vpop.permute.xlu0 %943
        %945 = vrot.lane.b32.xlu0 %v932, 96
        %v946 = vpop.permute.xlu0 %945
        %948 = vrot.lane.b32.xlu0 %v928, 64
        %v949 = vpop.permute.xlu0 %948
        %950 = vrot.lane.b32.xlu0 %v930, 64
        %v951 = vpop.permute.xlu0 %950
        %952 = vrot.lane.b32.xlu0 %v932, 64
        %v953 = vpop.permute.xlu0 %952
        %954 = vrot.lane.b32.xlu0 %v934, 64
        %v955 = vpop.permute.xlu0 %954
        %vm956 = vcmask 785408
        %v958 = vsel %vm956, %v924, %v940
        %v961 = vsel %vm956, %v926, %v942
        %v964 = vsel %vm956, %v928, %v944
        %v967 = vsel %vm956, %v930, %v946
        %v970 = vsel %vm495, %v940, %v949
        %v973 = vsel %vm495, %v942, %v951
        %v976 = vsel %vm495, %v944, %v953
        %v979 = vsel %vm495, %v946, %v955
        %v981 = vld [vmem:[%s5] sm:$0xf]
        %v982 = vld [vmem:[%s5 + $0x4] sm:$0xf]
        %v983 = vld [vmem:[%s5 + $0x8] sm:$0xf]
        %v984 = vld [vmem:[%s5 + $0xc] sm:$0xf]
        %v985 = vld [vmem:[%s5 + $0x10] sm:$0xf]
        %v986 = vld [vmem:[%s5 + $0x14] sm:$0xf]
        %v987 = vld [vmem:[%s5 + $0x18] sm:$0xf]
        %v988 = vld [vmem:[%s5 + $0x1c] sm:$0xf]
        %v989 = vld [vmem:[%s5 + $0x20] sm:$0xf]
        %v990 = vld [vmem:[%s5 + $0x24] sm:$0xf]
        %v991 = vld [vmem:[%s5 + $0x28] sm:$0xf]
        %v992 = vld [vmem:[%s5 + $0x2c] sm:$0xf]
        %v993 = vld [vmem:[%s5 + $0x30] sm:$0xf]
        %v994 = vld [vmem:[%s5 + $0x34] sm:$0xf]
        %v995 = vld [vmem:[%s5 + $0x38] sm:$0xf]
        %v996 = vld [vmem:[%s5 + $0x3c] sm:$0xf]
        %v997 = vld [vmem:[%s5 + $0x40] sm:$0xf]
        %v998 = vld [vmem:[%s5 + $0x44] sm:$0xf]
        %v999 = vld [vmem:[%s5 + $0x48] sm:$0xf]
        %v1000 = vld [vmem:[%s5 + $0x4c] sm:$0xf]
        %v1001 = vld [vmem:[%s5 + $0x50] sm:$0xf]
        %v1002 = vld [vmem:[%s5 + $0x54] sm:$0xf]
        %v1003 = vld [vmem:[%s5 + $0x58] sm:$0xf]
        %v1004 = vld [vmem:[%s5 + $0x5c] sm:$0xf]
        %v1005 = vld [vmem:[%s5 + $0x60] sm:$0xf]
        %v1006 = vld [vmem:[%s5 + $0x64] sm:$0xf]
        %v1007 = vld [vmem:[%s5 + $0x68] sm:$0xf]
        %v1008 = vld [vmem:[%s5 + $0x6c] sm:$0xf]
        %v1009 = vld [vmem:[%s5 + $0x70] sm:$0xf]
        %v1010 = vld [vmem:[%s5 + $0x74] sm:$0xf]
        %v1011 = vld [vmem:[%s5 + $0x78] sm:$0xf]
        %v1012 = vld [vmem:[%s5 + $0x7c] sm:$0xf]
        %v1013 = vld [vmem:[%s5 + $0x80] sm:$0xf]
        %v1014 = vld [vmem:[%s5 + $0x84] sm:$0xf]
        %v1015 = vld [vmem:[%s5 + $0x88] sm:$0xf]
        %v1016 = vld [vmem:[%s5 + $0x8c] sm:$0xf]
        %v1017 = vld [vmem:[%s6] sm:$0x1]
        %v1019 = vlaneseq
        %v1020 = vshrl.u32 %v1019, 7
        %v1021 = vsub.s32 0, %v1020
        %v1022 = vrot.slane %v1017, %v1021
        %v1060 = vunpack.c.l.b16 %v981
        %v1061 = vunpack.c.l.b16 %v982
        %v1062 = vunpack.c.l.b16 %v983
        %v1063 = vunpack.c.l.b16 %v984
        %v1064 = vunpack.c.l.b16 %v985
        %v1065 = vunpack.c.l.b16 %v986
        %v1066 = vunpack.c.l.b16 %v987
        %v1067 = vunpack.c.l.b16 %v988
        %v1068 = vunpack.c.l.b16 %v989
        %v1069 = vunpack.c.l.b16 %v990
        %v1070 = vunpack.c.l.b16 %v991
        %v1071 = vunpack.c.l.b16 %v992
        %v1072 = vunpack.c.l.b16 %v993
        %v1073 = vunpack.c.l.b16 %v994
        %v1074 = vunpack.c.l.b16 %v995
        %v1075 = vunpack.c.l.b16 %v996
        %v1076 = vunpack.c.l.b16 %v997
        %v1077 = vunpack.c.l.b16 %v998
        %v1078 = vunpack.c.l.b16 %v999
        %v1079 = vunpack.c.l.b16 %v1000
        %v1080 = vunpack.c.l.b16 %v1001
        %v1081 = vunpack.c.l.b16 %v1002
        %v1082 = vunpack.c.l.b16 %v1003
        %v1083 = vunpack.c.l.b16 %v1004
        %v1084 = vunpack.c.l.b16 %v1005
        %v1085 = vunpack.c.l.b16 %v1006
        %v1086 = vunpack.c.l.b16 %v1007
        %v1087 = vunpack.c.l.b16 %v1008
        %v1088 = vunpack.c.l.b16 %v1009
        %v1089 = vunpack.c.l.b16 %v1010
        %v1090 = vunpack.c.l.b16 %v1011
        %v1091 = vunpack.c.l.b16 %v1012
        %v1092 = vunpack.c.l.b16 %v1013
        %v1093 = vunpack.c.l.b16 %v1014
        %v1094 = vunpack.c.l.b16 %v1015
        %v1095 = vunpack.c.l.b16 %v1016
        %v1096 = vpack.c.b16 %v1061, %v1060
        %v1097 = vpack.c.b16 %v1063, %v1062
        %v1098 = vpack.c.b16 %v1065, %v1064
        %v1099 = vpack.c.b16 %v1067, %v1066
        %v1100 = vpack.c.b16 %v1069, %v1068
        %v1101 = vpack.c.b16 %v1071, %v1070
        %v1102 = vpack.c.b16 %v1073, %v1072
        %v1103 = vpack.c.b16 %v1075, %v1074
        %v1104 = vpack.c.b16 %v1077, %v1076
        %v1105 = vpack.c.b16 %v1079, %v1078
        %v1106 = vpack.c.b16 %v1081, %v1080
        %v1107 = vpack.c.b16 %v1083, %v1082
        %v1108 = vpack.c.b16 %v1085, %v1084
        %v1109 = vpack.c.b16 %v1087, %v1086
        %v1110 = vpack.c.b16 %v1089, %v1088
        %v1111 = vpack.c.b16 %v1091, %v1090
        %v1112 = vpack.c.b16 %v1093, %v1092
        %v1113 = vpack.c.b16 %v1095, %v1094
        %v1132 = vsel %vm904, %v949, 0
        %v1134 = vsel %vm904, %v951, 0
        %v1136 = vsel %vm904, %v953, 0
        %v1138 = vsel %vm904, %v955, 0
        %1140 = vmatprep.subr.bf16.mxu0 0
        %1141 = vmatpush1.bf16.msra.mxu0 %v1096
        %1142 = vmatprep.subr.bf16.mxu0 0
        %1143 = vmatpush1.bf16.msra.mxu0 %v1097
        %1144 = vmatprep.subr.bf16.mxu0 0
        %1145 = vmatpush1.bf16.msra.mxu0 %v1098
        %1146 = vmatprep.subr.bf16.mxu0 0
        %1147 = vmatpush1.bf16.msra.mxu0 %v1099
        %1148 = vmatprep.subr.bf16.mxu0 0
        %1149 = vmatpush1.bf16.msra.mxu0 %v1100
        %1150 = vmatprep.subr.bf16.mxu0 0
        %1151 = vmatpush1.bf16.msra.mxu0 %v1101
        %1152 = vmatprep.subr.bf16.mxu0 0
        %1153 = vmatpush1.bf16.msra.mxu0 %v1102
        %1154 = vmatprep.subr.bf16.mxu0 0
        %1155 = vmatpush1.bf16.msra.mxu0 %v1103
        %1156 = vmatprep.subr.bf16.mxu0 0
        %1157 = vmatpush1.bf16.msra.mxu0 %v1104
        %1158 = vmatprep.subr.bf16.mxu0 0
        %1159 = vmatpush1.bf16.msra.mxu0 %v1105
        %1160 = vmatprep.subr.bf16.mxu0 0
        %1161 = vmatpush1.bf16.msra.mxu0 %v1106
        %1162 = vmatprep.subr.bf16.mxu0 0
        %1163 = vmatpush1.bf16.msra.mxu0 %v1107
        %1164 = vmatprep.subr.bf16.mxu0 0
        %1165 = vmatpush1.bf16.msra.mxu0 %v1108
        %1166 = vmatprep.subr.bf16.mxu0 0
        %1167 = vmatpush1.bf16.msra.mxu0 %v1109
        %1168 = vmatprep.subr.bf16.mxu0 0
        %1169 = vmatpush1.bf16.msra.mxu0 %v1110
        %1170 = vmatprep.subr.bf16.mxu0 0
        %1171 = vmatpush1.bf16.msra.mxu0 %v1111
        %1172 = vmatprep.mubr.bf16.mxu0 %v970
        %1173 = vmatmul.mubr.bf16.gmra.mrb[0].mxu0 %v958
        %v1174 = vpop.f32.mrb[0].mxu0
        %v1175 = vadd.f32 %v1022, %v1174
        %v1176 = vpop.f32.mrb[0].mxu0
        %v1177 = vpop.f32.mrb[0].mxu0
        %v1178 = vadd.f32 %v1022, %v1177
        %v1179 = vpop.f32.mrb[0].mxu0
        %1180 = vmatprep.mubr.bf16.mxu0 %v973
        %1181 = vmatmul.mubr.bf16.gmra.mrb[0].mxu0 %v961
        %v1182 = vpop.f32.mrb[0].mxu0
        %v1183 = vadd.f32 %v1022, %v1182
        %v1184 = vpop.f32.mrb[0].mxu0
        %v1185 = vpop.f32.mrb[0].mxu0
        %v1186 = vadd.f32 %v1022, %v1185
        %v1187 = vpop.f32.mrb[0].mxu0
        %1188 = vmatprep.mubr.bf16.mxu0 %v976
        %1189 = vmatmul.mubr.bf16.gmra.mrb[0].mxu0 %v964
        %v1190 = vpop.f32.mrb[0].mxu0
        %v1191 = vadd.f32 %v1022, %v1190
        %v1192 = vpop.f32.mrb[0].mxu0
        %v1193 = vpop.f32.mrb[0].mxu0
        %v1194 = vadd.f32 %v1022, %v1193
        %v1195 = vpop.f32.mrb[0].mxu0
        %1196 = vmatprep.mubr.bf16.mxu0 %v979
        %1197 = vmatmul.mubr.bf16.gmra.mrb[0].mxu0 %v967
        %v1198 = vpop.f32.mrb[0].mxu0
        %v1199 = vadd.f32 %v1022, %v1198
        %v1200 = vpop.f32.mrb[0].mxu0
        %v1201 = vpop.f32.mrb[0].mxu0
        %v1202 = vadd.f32 %v1022, %v1201
        %v1203 = vpop.f32.mrb[0].mxu0
        %1204 = vdwg.mxu0
        %1205 = vmatprep.subr.bf16.mxu0 0
        %1206 = vmatpush1.bf16.msra.mxu0 %v1112
        %1207 = vmatprep.subr.bf16.mxu0 0
        %1208 = vmatpush1.bf16.msra.mxu0 %v1113
        %1209 = vmatprep.subr.bf16.mxu0 0
        %1210 = vmatpush1.bf16.msra.mxu0 0
        %1211 = vmatprep.subr.bf16.mxu0 0
        %1212 = vmatpush1.bf16.msra.mxu0 0
        %1213 = vmatprep.subr.bf16.mxu0 0
        %1214 = vmatpush1.bf16.msra.mxu0 0
        %1215 = vmatprep.subr.bf16.mxu0 0
        %1216 = vmatpush1.bf16.msra.mxu0 0
        %1217 = vmatprep.subr.bf16.mxu0 0
        %1218 = vmatpush1.bf16.msra.mxu0 0
        %1219 = vmatprep.subr.bf16.mxu0 0
        %1220 = vmatpush1.bf16.msra.mxu0 0
        %1221 = vmatprep.subr.bf16.mxu0 0
        %1222 = vmatpush1.bf16.msra.mxu0 0
        %1223 = vmatprep.subr.bf16.mxu0 0
        %1224 = vmatpush1.bf16.msra.mxu0 0
        %1225 = vmatprep.subr.bf16.mxu0 0
        %1226 = vmatpush1.bf16.msra.mxu0 0
        %1227 = vmatprep.subr.bf16.mxu0 0
        %1228 = vmatpush1.bf16.msra.mxu0 0
        %1229 = vmatprep.subr.bf16.mxu0 0
        %1230 = vmatpush1.bf16.msra.mxu0 0
        %1231 = vmatprep.subr.bf16.mxu0 0
        %1232 = vmatpush1.bf16.msra.mxu0 0
        %1233 = vmatprep.subr.bf16.mxu0 0
        %1234 = vmatpush1.bf16.msra.mxu0 0
        %1235 = vmatprep.subr.bf16.mxu0 0
        %1236 = vmatpush1.bf16.msra.mxu0 0
        %1237 = vmatprep.mubr.bf16.mxu0 0
        %1238 = vmatmul.mubr.bf16.gmra.mrb[0].mxu0 %v1132
        %v1239 = vpop.f32.mrb[0].mxu0
        %v1240 = vadd.f32 %v1175, %v1239
        %v1241 = vpop.f32.mrb[0].mxu0
        %v1242 = vpop.f32.mrb[0].mxu0
        %v1243 = vadd.f32 %v1178, %v1242
        %v1244 = vpop.f32.mrb[0].mxu0
        %1245 = vmatprep.mubr.bf16.mxu0 0
        %1246 = vmatmul.mubr.bf16.gmra.mrb[0].mxu0 %v1134
        %v1247 = vpop.f32.mrb[0].mxu0
        %v1248 = vadd.f32 %v1183, %v1247
        %v1249 = vpop.f32.mrb[0].mxu0
        %v1250 = vpop.f32.mrb[0].mxu0
        %v1251 = vadd.f32 %v1186, %v1250
        %v1252 = vpop.f32.mrb[0].mxu0
        %1253 = vmatprep.mubr.bf16.mxu0 0
        %1254 = vmatmul.mubr.bf16.gmra.mrb[0].mxu0 %v1136
        %v1255 = vpop.f32.mrb[0].mxu0
        %v1256 = vadd.f32 %v1191, %v1255
        %v1257 = vpop.f32.mrb[0].mxu0
        %v1258 = vpop.f32.mrb[0].mxu0
        %v1259 = vadd.f32 %v1194, %v1258
        %v1260 = vpop.f32.mrb[0].mxu0
        %1261 = vmatprep.mubr.bf16.mxu0 0
        %1262 = vmatmul.mubr.bf16.gmra.mrb[0].mxu0 %v1138
        %v1263 = vpop.f32.mrb[0].mxu0
        %v1264 = vadd.f32 %v1199, %v1263
        %v1265 = vpop.f32.mrb[0].mxu0
        %v1266 = vpop.f32.mrb[0].mxu0
        %v1267 = vadd.f32 %v1202, %v1266
        %v1268 = vpop.f32.mrb[0].mxu0
        %1269 = vdwg.mxu0
        %v1270 = vmul.f32 %v1240, 0.1
        %v1271 = vmul.f32 %v1243, 0.1
        %v1272 = vmul.f32 %v1248, 0.1
        %v1273 = vmul.f32 %v1251, 0.1
        %v1274 = vmul.f32 %v1256, 0.1
        %v1275 = vmul.f32 %v1259, 0.1
        %v1276 = vmul.f32 %v1264, 0.1
        %v1277 = vmul.f32 %v1267, 0.1
        %v1278 = vmax.f32 %v1240, %v1270
        %v1279 = vmax.f32 %v1243, %v1271
        %v1280 = vmax.f32 %v1248, %v1272
        %v1281 = vmax.f32 %v1251, %v1273
        %v1282 = vmax.f32 %v1256, %v1274
        %v1283 = vmax.f32 %v1259, %v1275
        %v1284 = vmax.f32 %v1264, %v1276
        %v1285 = vmax.f32 %v1267, %v1277
        %v1286 = vadd.f32 %v440, %v1278
        %v1287 = vadd.f32 %v441, %v1279
        %v1288 = vadd.f32 %v442, %v1280
        %v1289 = vadd.f32 %v443, %v1281
        %v1290 = vadd.f32 %v444, %v1282
        %v1291 = vadd.f32 %v445, %v1283
        %v1292 = vadd.f32 %v446, %v1284
        %v1293 = vadd.f32 %v447, %v1285
        %1294 = vst.msk [vmem:[%s424] sm:$0xff] %vm495, %v1286
        %1295 = vst.msk [vmem:[%s424 + $0x8] sm:$0xff] %vm495, %v1287
        %1296 = vst.msk [vmem:[%s424 + $0x10] sm:$0xff] %vm495, %v1288
        %1297 = vst.msk [vmem:[%s424 + $0x18] sm:$0xff] %vm495, %v1289
        %1298 = vst.msk [vmem:[%s424 + $0x20] sm:$0xff] %vm495, %v1290
        %1299 = vst.msk [vmem:[%s424 + $0x28] sm:$0xff] %vm495, %v1291
        %1300 = vst.msk [vmem:[%s424 + $0x30] sm:$0xff] %vm495, %v1292
        %1301 = vst.msk [vmem:[%s424 + $0x38] sm:$0xff] %vm495, %v1293
        %s1302 = sand.u32 %s233, 1
        %s1303 = scalar_lea.sflag [#allocation4], %s1302
        %s1304 = sand.u32 %s233, 1
        %s1305 = smul.addr %s1304, 64
        %s1306 = scalar_lea.vmem [#allocation8], %s1305
        // Predicated region
        $region61: #{stage_block_nhwc.1} parent=47 // pred_check
          %p1307 = pneg %p243
        $region62: #{stage_block_nhwc.1} parent=47 // pred_check_branch
          %1309 = sbr.rel (%p1307) target = $region64
        $region63: #{stage_block_nhwc.1} parent=47 // pred_region
          %s1310 = smul.u32 4, %s32
          %s1312 = ssub.s32 1024, 1024
          %1313 = vsyncadd %s1303, %s1312
          %s1314 = smul.addr %s1310, 2
          %s1315 = smul.addr %s31, 32
          %s1316 = sadd.s32 %s1314, %s1315
          %s1317 = smul.addr %s1316, 128
          %s1318 = scalar_lea.hbm %s7, %s1317
          %s1319 = sshll.u32 %s1306, 4
          %s1320 = int_to_ptr.vmem [resolvable:$true] %s1319
          %1325 = dma.vmem_to_hbm [thread:$0]  %s1320, 1024, %s1318, %s1303, 128, 128, 8
        $region64: #{stage_block_nhwc.1} parent=47 // pred_fallthru
          _
      $region48: #{stage_block_nhwc.1} parent=5 // pred_fallthru
        _
      %p1326 = scmp.le.s32.totalorder 2, %s22
      // Predicated region
      $region65: #{stage_block_nhwc.1} parent=5 // pred_check
        %p1327 = pneg %p1326
      $region66: #{stage_block_nhwc.1} parent=5 // pred_check_branch
        %1329 = sbr.rel (%p1327) target = $region68
      $region67: #{stage_block_nhwc.1} parent=5 // pred_region
        %s1330 = ssub.s32 %s22, 2
        // Predicated region
        $region69: #{stage_block_nhwc.1} parent=67 // pred_check
          %p1331 = pneg %p249
        $region70: #{stage_block_nhwc.1} parent=67 // pred_check_branch
          %1333 = sbr.rel (%p1331) target = $region72
        $region71: #{stage_block_nhwc.1} parent=67 // pred_region
          %s1334 = sand.u32 %s234, 1
          %s1335 = scalar_lea.sflag [#allocation4], %s1334
          %s1336 = sand.u32 %s234, 1
          %s1337 = smul.addr %s1336, 64
          %s1338 = scalar_lea.vmem [#allocation8], %s1337
          %1339 = dma.done %s1335, 1024
        $region72: #{stage_block_nhwc.1} parent=67 // pred_fallthru
          _
      $region68: #{stage_block_nhwc.1} parent=5 // pred_fallthru
        _
    $region6: #{stage_block_nhwc.1} parent=1 // loop_footer
      %s26 = sadd.s32 1, %s22
    $region7: #{stage_block_nhwc.1} parent=1 // loop_footer_branch
      %21 = sbr.rel target = $region3
    $region8: #{stage_block_nhwc.1} parent=1 // loop_exit
      _
    %1340 = vsyncpa [#allocation3], 1
    %s1341 = scalar_lea.sflag [#allocation3], 1
    %1342 = vsyncpa %s1341, 1
    %1343 = vsyncpa [#allocation6], 1
    %s1344 = scalar_lea.sflag [#allocation6], 1
    %1345 = vsyncpa %s1344, 1
    %1346 = vsyncpa [#allocation4], 1
    %s1347 = scalar_lea.sflag [#allocation4], 1
    %1348 = vsyncpa %s1347, 1

</llo_original>
